<compile_context>
chip_gen: v7x
topology: tpu7x:2x2x1
jax: 0.10.0
libtpu: 0.0.40
codegen_flags: <defaults>
</compile_context>

<pallas_src>
import jax
import jax.numpy as jnp
import numpy as np
from jax.experimental import pallas as pl
from jax.experimental.pallas import tpu as pltpu

K = 3          # kernel size
STRIDE = 2
PAD = 1
OUT_PAD = 1
EPS = 1e-5     # BatchNorm2d default eps

SHIFTS = ((0, 0), (0, 1), (1, 0), (1, 1))       # (sy, sx) input shifts
PHASES = ((0, 0), (0, 1), (1, 0), (1, 1))       # (dy, dx) output sub-pixel phases
# shift indices (into SHIFTS) whose weight tap is non-zero for each phase
PHASE_SHIFT_IDS = ((0,), (0, 1), (0, 2), (0, 1, 2, 3))


def _tap(d, s):
    """Flipped-3x3-kernel tap index used by output phase d with input shift s."""
    if d == 0:
        return 1 if s == 0 else None
    return 0 if s == 0 else 2


def _phase_col_start(pi, ci):
    return ci * sum(len(PHASE_SHIFT_IDS[q]) for q in range(pi))


def _pack_weights(w_t):
    """(Cin, Cout, 3, 3) ConvTranspose2d weight -> (Cout, 9*Cin) packed phase blocks."""
    w = w_t.astype(jnp.float32)
    cols = []
    for pi, (dy, dx) in enumerate(PHASES):
        for s in PHASE_SHIFT_IDS[pi]:
            sy, sx = SHIFTS[s]
            kh, kw = _tap(dy, sy), _tap(dx, sx)
            assert kh is not None and kw is not None
            # spatially-flipped tap of the ConvTranspose weight, (Cout, Cin)
            cols.append(jnp.transpose(w[:, :, K - 1 - kh, K - 1 - kw]))
    return jnp.concatenate(cols, axis=1)            # (Cout, 9*Cin)


def _make_kernel(Ci, Co, H, W, N):
    HW = H * W
    cnt_tile = 4.0 * HW                   # samples per channel contributed by one image
    inv_tile = 1.0 / cnt_tile
    inv_total = 1.0 / (N * cnt_tile)      # == 1 / (N * Ho * Wo)
    shift_offs = tuple(sy * W + sx for sy, sx in SHIFTS)   # (0, 1, W, W+1)

    def kernel(x_ref, mask_ref, w_ref, gamma_ref, beta_ref, o_ref,
               sum_ref, ssq_ref, msq_ref):
        p = pl.program_id(0)              # 0: stats pass, 1: normalize+store pass
        n = pl.program_id(1)              # image tile

        # ---- 4 shifted taps of this image, built in VMEM (no 4x HBM im2col) --
        x = x_ref[...]                    # (Ci, HW + pad) f32, zero-padded tail
        m = mask_ref[...]                 # (4, HW) f32, 0/1 in-bounds tap masks
        shifted = []
        for s, off in enumerate(shift_offs):
            xs = x[:, off:off + HW]                       # static lane-offset slice
            if off != 0:
                xs = xs * m[s:s + 1, :]                   # zero the wrapped taps
            shifted.append(xs.astype(jnp.bfloat16))

        # ---- sub-pixel transposed conv: one dense bf16 matmul per phase ------
        # (structurally-zero weight blocks dropped: K = Ci, 2Ci, 2Ci, 4Ci)
        w = w_ref[...]                    # (Co, 9*Ci) bf16
        ys = []
        for pi in range(4):
            ids = PHASE_SHIFT_IDS[pi]
            if len(ids) == 1:
                xin = shifted[ids[0]]
            else:
                xin = jnp.concatenate([shifted[s] for s in ids], axis=0)
            start = _phase_col_start(pi, Ci)
            wblk = w[:, start:start + len(ids) * Ci]
            ys.append(jnp.dot(wblk, xin, preferred_element_type=jnp.float32))

        # ---- pass 0: accumulate per-channel batch statistics in scratch ------
        @pl.when(jnp.logical_and(p == 0, n == 0))
        def _init():
            sum_ref[...] = jnp.zeros_like(sum_ref)
            ssq_ref[...] = jnp.zeros_like(ssq_ref)
            msq_ref[...] = jnp.zeros_like(msq_ref)

        @pl.when(p == 0)
        def _stats():
            tsum = (ys[0].sum(axis=1, keepdims=True)
                    + ys[1].sum(axis=1, keepdims=True)
                    + ys[2].sum(axis=1, keepdims=True)
                    + ys[3].sum(axis=1, keepdims=True))           # (Co, 1)
            tmean = tsum * inv_tile
            tssq = jnp.zeros_like(tsum)
            for pi in range(4):
                d = ys[pi] - tmean
                tssq = tssq + (d * d).sum(axis=1, keepdims=True)
            sum_ref[...] += tsum
            ssq_ref[...] += tssq                                  # centered at tile mean
            msq_ref[...] += tmean * tmean

        # ---- pass 1: finalize stats, BN affine + ReLU, lane-dense stores -----
        @pl.when(p == 1)
        def _apply():
            mean = sum_ref[...] * inv_total                       # (Co, 1)
            # exact combination of tile-centered sums of squares
            var = (ssq_ref[...] + cnt_tile * msq_ref[...]) * inv_total - mean * mean
            var = jnp.maximum(var, 0.0)
            scale = gamma_ref[...] * jax.lax.rsqrt(var + EPS)
            shift = beta_ref[...] - mean * scale
            for pi in range(4):
                o_ref[pi, :, :] = jnp.maximum(ys[pi] * scale + shift, 0.0)

    return kernel


@jax.jit
def upsampling_conv_bn_relu(x_nchw, w_t, bias, gamma, beta):
    """Forward of UpsamplinConvBNReLU (training-mode BatchNorm).

    x_nchw: (N, Cin, H, W) float32
    w_t:    (Cin, Cout, 3, 3)  ConvTranspose2d.weight
    bias:   (Cout,)            ConvTranspose2d.bias (cancels under batch-mean subtraction)
    gamma, beta: (Cout,)       BatchNorm2d.weight / .bias
    Returns (N, Cout, 2H, 2W) float32.
    """
    del bias  # analytically cancelled by training-mode BN mean subtraction
    N, Ci, H, W = x_nchw.shape
    Co = w_t.shape[1]
    Ho, Wo = STRIDE * H, STRIDE * W
    HW = H * W
    # pad each flattened image so every shifted tap is a plain static slice
    HWP = ((HW + W + 1 + 127) // 128) * 128

    x_flat = x_nchw.astype(jnp.float32).reshape(N, Ci, HW)
    x_pad = jnp.pad(x_flat, ((0, 0), (0, 0), (0, HWP - HW)))     # (N, Ci, HWP)

    # 0/1 masks: tap (sy, sx) is valid iff it stays inside the HxW image
    r_idx = jnp.arange(HW, dtype=jnp.int32) // W
    c_idx = jnp.arange(HW, dtype=jnp.int32) % W
    masks = jnp.stack(
        [((r_idx < H - sy) & (c_idx < W - sx)).astype(jnp.float32) for sy, sx in SHIFTS],
        axis=0)                                                  # (4, HW)

    w_packed = _pack_weights(w_t).astype(jnp.bfloat16)           # (Co, 9*Ci)
    gamma2 = gamma.astype(jnp.float32).reshape(Co, 1)
    beta2 = beta.astype(jnp.float32).reshape(Co, 1)

    out4 = pl.pallas_call(
        _make_kernel(Ci, Co, H, W, N),
        out_shape=jax.ShapeDtypeStruct((N, 4, Co, HW), jnp.float32),
        grid_spec=pltpu.PrefetchScalarGridSpec(
            num_scalar_prefetch=0,
            grid=(2, N),                                         # (pass, image tile)
            in_specs=[
                pl.BlockSpec((None, Ci, HWP), lambda p, n: (n, 0, 0)),
                pl.BlockSpec((4, HW), lambda p, n: (0, 0)),
                pl.BlockSpec((Co, 9 * Ci), lambda p, n: (0, 0)),
                pl.BlockSpec((Co, 1), lambda p, n: (0, 0)),
                pl.BlockSpec((Co, 1), lambda p, n: (0, 0)),
            ],
            # During the stats pass (p==0) every step maps to output block 0 and the
            # kernel never writes it, so no garbage block is flushed to HBM; the
            # normalize pass (p==1) writes block n exactly once.
            out_specs=pl.BlockSpec((None, 4, Co, HW), lambda p, n: (n * p, 0, 0, 0)),
            scratch_shapes=[pltpu.VMEM((Co, 1), jnp.float32)] * 3),
        compiler_params=pltpu.CompilerParams(
            dimension_semantics=("arbitrary", "arbitrary")),
        cost_estimate=pl.CostEstimate(
            flops=2 * (2 * N) * 9 * Ci * Co * HW + 10 * N * 4 * Co * HW,
            transcendentals=N * Co,
            bytes_accessed=4 * (2 * N * Ci * HWP + N * 4 * Co * HW + 4 * HW + 4 * Co)
                           + 2 * 9 * Ci * Co),
    )(x_pad, masks, w_packed, gamma2, beta2)

    # De-interleave the 4 sub-pixel phases into NCHW.
    # TODO(synk): one XLA transpose pass over the output remains; eliminating it
    # requires a phase-planar consumer contract or an in-kernel interleave.
    out6 = out4.reshape(N, 2, 2, Co, H, W)          # (n, dy, dx, co, r, c)
    out = jnp.transpose(out6, (0, 3, 4, 1, 5, 2))   # (n, co, r, dy, c, dx)
    return out.reshape(N, Co, Ho, Wo)


def _reference(x_nchw, w_t, bias, gamma, beta, operand_dtype=jnp.float32):
    """Pure-JAX reference: ConvTranspose2d (+bias) -> BatchNorm2d(train) -> ReLU."""
    x = jnp.transpose(x_nchw, (0, 2, 3, 1)).astype(operand_dtype)
    w_hwio = jnp.transpose(w_t[:, :, ::-1, ::-1], (2, 3, 0, 1)).astype(operand_dtype)
    y = jax.lax.conv_general_dilated(
        x, w_hwio, window_strides=(1, 1),
        padding=((K - 1 - PAD, K - 1 - PAD + OUT_PAD),) * 2,
        lhs_dilation=(STRIDE, STRIDE),
        dimension_numbers=("NHWC", "HWIO", "NHWC"),
        preferred_element_type=jnp.float32) + bias
    mean = jnp.mean(y, axis=(0, 1, 2))
    var = jnp.mean((y - mean) ** 2, axis=(0, 1, 2))
    out = jnp.maximum((y - mean) / jnp.sqrt(var + EPS) * gamma + beta, 0.0)
    return jnp.transpose(out, (0, 3, 1, 2))


if __name__ == "__main__":
    key = jax.random.PRNGKey(0)
    k1, k2, k3, k4, k5 = jax.random.split(key, 5)

    N, Cin, Cout, H, W = 2, 4, 8, 16, 16
    x = jax.random.normal(k1, (N, Cin, H, W), jnp.float32)
    # Deterministic synthetic parameters (shapes match the PyTorch module).
    w_t = 0.1 * jax.random.normal(k2, (Cin, Cout, K, K), jnp.float32)   # deconv.weight
    bias = 0.1 * jax.random.normal(k3, (Cout,), jnp.float32)            # deconv.bias
    gamma = 1.0 + 0.1 * jax.random.normal(k4, (Cout,), jnp.float32)     # bn.weight
    beta = 0.1 * jax.random.normal(k5, (Cout,), jnp.float32)            # bn.bias

    out = jax.block_until_ready(upsampling_conv_bn_relu(x, w_t, bias, gamma, beta))
    assert out.shape == (N, Cout, 2 * H, 2 * W)

    # Kernel-exactness check: reference using the same bf16-rounded MXU operands.
    ref_bf16 = _reference(x, w_t, bias, gamma, beta, operand_dtype=jnp.bfloat16)
    np.testing.assert_allclose(np.asarray(out), np.asarray(ref_bf16), rtol=2e-3, atol=2e-3)

    # End-to-end check against the full-f32 module semantics (bf16 MXU rounding).
    ref_f32 = _reference(x, w_t, bias, gamma, beta, operand_dtype=jnp.float32)
    np.testing.assert_allclose(np.asarray(out), np.asarray(ref_f32), rtol=2e-2, atol=2e-2)

    print("KERNEL_OK")
</pallas_src>

<mosaic_0001>
module attributes {stable_mosaic.version = 11 : i64} {
  func.func @kernel(%arg0: i32, %arg1: i32, %arg2: memref<1x4x384xf32, #tpu.memory_space<vmem>>, %arg3: memref<4x256xf32, #tpu.memory_space<vmem>>, %arg4: memref<8x36xbf16, #tpu.memory_space<vmem>>, %arg5: memref<8x1xf32, #tpu.memory_space<vmem>>, %arg6: memref<8x1xf32, #tpu.memory_space<vmem>>, %arg7: memref<1x4x8x256xf32, #tpu.memory_space<vmem>>, %arg8: memref<8x1xf32, #tpu.memory_space<vmem>>, %arg9: memref<8x1xf32, #tpu.memory_space<vmem>>, %arg10: memref<8x1xf32, #tpu.memory_space<vmem>>) attributes {dimension_semantics = [#tpu.dimension_semantics<arbitrary>, #tpu.dimension_semantics<arbitrary>], iteration_bounds = array<i64: 2, 2>, scalar_prefetch = 0 : i64, scratch_operands = 3 : i64, tpu.core_type = #tpu.core_type<tc>, window_params = [{transform_indices = @transform_0, window_bounds = array<i64: 1, 4, 384>}, {pipeline_mode = #tpu.pipeline_mode<synchronous>, transform_indices = @transform_1, window_bounds = array<i64: 4, 256>}, {pipeline_mode = #tpu.pipeline_mode<synchronous>, transform_indices = @transform_2, window_bounds = array<i64: 8, 36>}, {pipeline_mode = #tpu.pipeline_mode<synchronous>, transform_indices = @transform_3, window_bounds = array<i64: 8, 1>}, {pipeline_mode = #tpu.pipeline_mode<synchronous>, transform_indices = @transform_4, window_bounds = array<i64: 8, 1>}, {transform_indices = @transform_5, window_bounds = array<i64: 1, 4, 8, 256>}]} {
    %c0 = arith.constant 0 : index
    %c0_0 = arith.constant 0 : index
    %c0_1 = arith.constant 0 : index
    %0 = vector.load %arg2[%c0, %c0_0, %c0_1] : memref<1x4x384xf32, #tpu.memory_space<vmem>>, vector<1x4x384xf32>
    %1 = vector.shape_cast %0 : vector<1x4x384xf32> to vector<4x384xf32>
    %c0_2 = arith.constant 0 : index
    %c0_3 = arith.constant 0 : index
    %2 = vector.load %arg3[%c0_2, %c0_3] : memref<4x256xf32, #tpu.memory_space<vmem>>, vector<4x256xf32>
    %3 = vector.extract_strided_slice %1 {offsets = [0, 0], sizes = [4, 256], strides = [1, 1]} : vector<4x384xf32> to vector<4x256xf32>
    %4 = arith.truncf %3 : vector<4x256xf32> to vector<4x256xbf16>
    %5 = vector.extract_strided_slice %1 {offsets = [0, 1], sizes = [4, 256], strides = [1, 1]} : vector<4x384xf32> to vector<4x256xf32>
    %6 = vector.extract_strided_slice %2 {offsets = [1, 0], sizes = [1, 256], strides = [1, 1]} : vector<4x256xf32> to vector<1x256xf32>
    %7 = vector.broadcast %6 : vector<1x256xf32> to vector<4x256xf32>
    %8 = arith.mulf %5, %7 : vector<4x256xf32>
    %9 = arith.truncf %8 : vector<4x256xf32> to vector<4x256xbf16>
    %10 = vector.extract_strided_slice %1 {offsets = [0, 16], sizes = [4, 256], strides = [1, 1]} : vector<4x384xf32> to vector<4x256xf32>
    %11 = vector.extract_strided_slice %2 {offsets = [2, 0], sizes = [1, 256], strides = [1, 1]} : vector<4x256xf32> to vector<1x256xf32>
    %12 = vector.broadcast %11 : vector<1x256xf32> to vector<4x256xf32>
    %13 = arith.mulf %10, %12 : vector<4x256xf32>
    %14 = arith.truncf %13 : vector<4x256xf32> to vector<4x256xbf16>
    %15 = vector.extract_strided_slice %1 {offsets = [0, 17], sizes = [4, 256], strides = [1, 1]} : vector<4x384xf32> to vector<4x256xf32>
    %16 = vector.extract_strided_slice %2 {offsets = [3, 0], sizes = [1, 256], strides = [1, 1]} : vector<4x256xf32> to vector<1x256xf32>
    %17 = vector.broadcast %16 : vector<1x256xf32> to vector<4x256xf32>
    %18 = arith.mulf %15, %17 : vector<4x256xf32>
    %19 = arith.truncf %18 : vector<4x256xf32> to vector<4x256xbf16>
    %c0_4 = arith.constant 0 : index
    %c0_5 = arith.constant 0 : index
    %20 = vector.load %arg4[%c0_4, %c0_5] : memref<8x36xbf16, #tpu.memory_space<vmem>>, vector<8x36xbf16>
    %21 = vector.extract_strided_slice %20 {offsets = [0, 0], sizes = [8, 4], strides = [1, 1]} : vector<8x36xbf16> to vector<8x4xbf16>
    %cst = arith.constant dense<0.000000e+00> : vector<8x256xf32>
    %22 = tpu.matmul %21, %4, %cst {dimension_numbers = #tpu.dot_dimension_numbers<[1], [0], [0], [1], [0, 0, 1, 1], [], []>} : vector<8x4xbf16>, vector<4x256xbf16>, vector<8x256xf32> -> vector<8x256xf32>
    %23 = tpu.concatenate %4, %9 in 0 : vector<4x256xbf16>, vector<4x256xbf16> -> vector<8x256xbf16>
    %24 = vector.extract_strided_slice %20 {offsets = [0, 4], sizes = [8, 8], strides = [1, 1]} : vector<8x36xbf16> to vector<8x8xbf16>
    %cst_6 = arith.constant dense<0.000000e+00> : vector<8x256xf32>
    %25 = tpu.matmul %24, %23, %cst_6 {dimension_numbers = #tpu.dot_dimension_numbers<[1], [0], [0], [1], [0, 0, 1, 1], [], []>} : vector<8x8xbf16>, vector<8x256xbf16>, vector<8x256xf32> -> vector<8x256xf32>
    %26 = tpu.concatenate %4, %14 in 0 : vector<4x256xbf16>, vector<4x256xbf16> -> vector<8x256xbf16>
    %27 = vector.extract_strided_slice %20 {offsets = [0, 12], sizes = [8, 8], strides = [1, 1]} : vector<8x36xbf16> to vector<8x8xbf16>
    %cst_7 = arith.constant dense<0.000000e+00> : vector<8x256xf32>
    %28 = tpu.matmul %27, %26, %cst_7 {dimension_numbers = #tpu.dot_dimension_numbers<[1], [0], [0], [1], [0, 0, 1, 1], [], []>} : vector<8x8xbf16>, vector<8x256xbf16>, vector<8x256xf32> -> vector<8x256xf32>
    %29 = tpu.concatenate %4, %9, %14, %19 in 0 : vector<4x256xbf16>, vector<4x256xbf16>, vector<4x256xbf16>, vector<4x256xbf16> -> vector<16x256xbf16>
    %30 = vector.extract_strided_slice %20 {offsets = [0, 20], sizes = [8, 16], strides = [1, 1]} : vector<8x36xbf16> to vector<8x16xbf16>
    %cst_8 = arith.constant dense<0.000000e+00> : vector<8x256xf32>
    %31 = tpu.matmul %30, %29, %cst_8 {dimension_numbers = #tpu.dot_dimension_numbers<[1], [0], [0], [1], [0, 0, 1, 1], [], []>} : vector<8x16xbf16>, vector<16x256xbf16>, vector<8x256xf32> -> vector<8x256xf32>
    %c0_i32 = arith.constant 0 : i32
    %32 = arith.cmpi eq, %arg0, %c0_i32 : i32
    %c0_i32_9 = arith.constant 0 : i32
    %33 = arith.cmpi eq, %arg1, %c0_i32_9 : i32
    %34 = arith.andi %32, %33 : i1
    %35 = arith.extui %34 : i1 to i32
    %c0_i32_10 = arith.constant 0 : i32
    %36 = arith.cmpi ne, %35, %c0_i32_10 : i32
    scf.if %36 {
      %cst_14 = arith.constant 0.000000e+00 : f32
      %43 = vector.broadcast %cst_14 : f32 to vector<8x1xf32>
      %c0_15 = arith.constant 0 : index
      %c0_16 = arith.constant 0 : index
      %44 = vector.load %arg8[%c0_15, %c0_16] : memref<8x1xf32, #tpu.memory_space<vmem>>, vector<8x1xf32>
      tpu.vector_store %arg8[%c0_15, %c0_16], %43 {strides = array<i32>} : memref<8x1xf32, #tpu.memory_space<vmem>>, vector<8x1xf32>,
      %cst_17 = arith.constant 0.000000e+00 : f32
      %45 = vector.broadcast %cst_17 : f32 to vector<8x1xf32>
      %c0_18 = arith.constant 0 : index
      %c0_19 = arith.constant 0 : index
      %46 = vector.load %arg9[%c0_18, %c0_19] : memref<8x1xf32, #tpu.memory_space<vmem>>, vector<8x1xf32>
      tpu.vector_store %arg9[%c0_18, %c0_19], %45 {strides = array<i32>} : memref<8x1xf32, #tpu.memory_space<vmem>>, vector<8x1xf32>,
      %cst_20 = arith.constant 0.000000e+00 : f32
      %47 = vector.broadcast %cst_20 : f32 to vector<8x1xf32>
      %c0_21 = arith.constant 0 : index
      %c0_22 = arith.constant 0 : index
      %48 = vector.load %arg10[%c0_21, %c0_22] : memref<8x1xf32, #tpu.memory_space<vmem>>, vector<8x1xf32>
      tpu.vector_store %arg10[%c0_21, %c0_22], %47 {strides = array<i32>} : memref<8x1xf32, #tpu.memory_space<vmem>>, vector<8x1xf32>,
    } else {
    }
    %c0_i32_11 = arith.constant 0 : i32
    %37 = arith.cmpi eq, %arg0, %c0_i32_11 : i32
    %38 = arith.extui %37 : i1 to i32
    %c0_i32_12 = arith.constant 0 : i32
    %39 = arith.cmpi ne, %38, %c0_i32_12 : i32
    scf.if %39 {
      %cst_14 = arith.constant dense<0.000000e+00> : vector<8xf32>
      %43 = vector.multi_reduction <add>, %22, %cst_14 [1] : vector<8x256xf32> to vector<8xf32>
      %44 = vector.shape_cast %43 : vector<8xf32> to vector<8x1xf32>
      %cst_15 = arith.constant dense<0.000000e+00> : vector<8xf32>
      %45 = vector.multi_reduction <add>, %25, %cst_15 [1] : vector<8x256xf32> to vector<8xf32>
      %46 = vector.shape_cast %45 : vector<8xf32> to vector<8x1xf32>
      %47 = arith.addf %44, %46 : vector<8x1xf32>
      %cst_16 = arith.constant dense<0.000000e+00> : vector<8xf32>
      %48 = vector.multi_reduction <add>, %28, %cst_16 [1] : vector<8x256xf32> to vector<8xf32>
      %49 = vector.shape_cast %48 : vector<8xf32> to vector<8x1xf32>
      %50 = arith.addf %47, %49 : vector<8x1xf32>
      %cst_17 = arith.constant dense<0.000000e+00> : vector<8xf32>
      %51 = vector.multi_reduction <add>, %31, %cst_17 [1] : vector<8x256xf32> to vector<8xf32>
      %52 = vector.shape_cast %51 : vector<8xf32> to vector<8x1xf32>
      %53 = arith.addf %50, %52 : vector<8x1xf32>
      %cst_18 = arith.constant 9.765625E-4 : f32
      %54 = vector.broadcast %cst_18 : f32 to vector<8x1xf32>
      %55 = arith.mulf %53, %54 : vector<8x1xf32>
      %cst_19 = arith.constant 0.000000e+00 : f32
      %56 = vector.broadcast %cst_19 : f32 to vector<8x1xf32>
      %57 = vector.broadcast %55 : vector<8x1xf32> to vector<8x256xf32>
      %58 = arith.subf %22, %57 : vector<8x256xf32>
      %59 = arith.mulf %58, %58 : vector<8x256xf32>
      %cst_20 = arith.constant dense<0.000000e+00> : vector<8xf32>
      %60 = vector.multi_reduction <add>, %59, %cst_20 [1] : vector<8x256xf32> to vector<8xf32>
      %61 = vector.shape_cast %60 : vector<8xf32> to vector<8x1xf32>
      %62 = arith.addf %56, %61 : vector<8x1xf32>
      %63 = vector.broadcast %55 : vector<8x1xf32> to vector<8x256xf32>
      %64 = arith.subf %25, %63 : vector<8x256xf32>
      %65 = arith.mulf %64, %64 : vector<8x256xf32>
      %cst_21 = arith.constant dense<0.000000e+00> : vector<8xf32>
      %66 = vector.multi_reduction <add>, %65, %cst_21 [1] : vector<8x256xf32> to vector<8xf32>
      %67 = vector.shape_cast %66 : vector<8xf32> to vector<8x1xf32>
      %68 = arith.addf %62, %67 : vector<8x1xf32>
      %69 = vector.broadcast %55 : vector<8x1xf32> to vector<8x256xf32>
      %70 = arith.subf %28, %69 : vector<8x256xf32>
      %71 = arith.mulf %70, %70 : vector<8x256xf32>
      %cst_22 = arith.constant dense<0.000000e+00> : vector<8xf32>
      %72 = vector.multi_reduction <add>, %71, %cst_22 [1] : vector<8x256xf32> to vector<8xf32>
      %73 = vector.shape_cast %72 : vector<8xf32> to vector<8x1xf32>
      %74 = arith.addf %68, %73 : vector<8x1xf32>
      %75 = vector.broadcast %55 : vector<8x1xf32> to vector<8x256xf32>
      %76 = arith.subf %31, %75 : vector<8x256xf32>
      %77 = arith.mulf %76, %76 : vector<8x256xf32>
      %cst_23 = arith.constant dense<0.000000e+00> : vector<8xf32>
      %78 = vector.multi_reduction <add>, %77, %cst_23 [1] : vector<8x256xf32> to vector<8xf32>
      %79 = vector.shape_cast %78 : vector<8xf32> to vector<8x1xf32>
      %80 = arith.addf %74, %79 : vector<8x1xf32>
      %c0_24 = arith.constant 0 : index
      %c0_25 = arith.constant 0 : index
      %81 = vector.load %arg8[%c0_24, %c0_25] : memref<8x1xf32, #tpu.memory_space<vmem>>, vector<8x1xf32>
      %82 = arith.addf %81, %53 : vector<8x1xf32>
      %c0_26 = arith.constant 0 : index
      %c0_27 = arith.constant 0 : index
      %83 = vector.load %arg8[%c0_26, %c0_27] : memref<8x1xf32, #tpu.memory_space<vmem>>, vector<8x1xf32>
      tpu.vector_store %arg8[%c0_26, %c0_27], %82 {strides = array<i32>} : memref<8x1xf32, #tpu.memory_space<vmem>>, vector<8x1xf32>,
      %c0_28 = arith.constant 0 : index
      %c0_29 = arith.constant 0 : index
      %84 = vector.load %arg9[%c0_28, %c0_29] : memref<8x1xf32, #tpu.memory_space<vmem>>, vector<8x1xf32>
      %85 = arith.addf %84, %80 : vector<8x1xf32>
      %c0_30 = arith.constant 0 : index
      %c0_31 = arith.constant 0 : index
      %86 = vector.load %arg9[%c0_30, %c0_31] : memref<8x1xf32, #tpu.memory_space<vmem>>, vector<8x1xf32>
      tpu.vector_store %arg9[%c0_30, %c0_31], %85 {strides = array<i32>} : memref<8x1xf32, #tpu.memory_space<vmem>>, vector<8x1xf32>,
      %c0_32 = arith.constant 0 : index
      %c0_33 = arith.constant 0 : index
      %87 = vector.load %arg10[%c0_32, %c0_33] : memref<8x1xf32, #tpu.memory_space<vmem>>, vector<8x1xf32>
      %88 = arith.mulf %55, %55 : vector<8x1xf32>
      %89 = arith.addf %87, %88 : vector<8x1xf32>
      %c0_34 = arith.constant 0 : index
      %c0_35 = arith.constant 0 : index
      %90 = vector.load %arg10[%c0_34, %c0_35] : memref<8x1xf32, #tpu.memory_space<vmem>>, vector<8x1xf32>
      tpu.vector_store %arg10[%c0_34, %c0_35], %89 {strides = array<i32>} : memref<8x1xf32, #tpu.memory_space<vmem>>, vector<8x1xf32>,
    } else {
    }
    %c1_i32 = arith.constant 1 : i32
    %40 = arith.cmpi eq, %arg0, %c1_i32 : i32
    %41 = arith.extui %40 : i1 to i32
    %c0_i32_13 = arith.constant 0 : i32
    %42 = arith.cmpi ne, %41, %c0_i32_13 : i32
    scf.if %42 {
      %c0_14 = arith.constant 0 : index
      %c0_15 = arith.constant 0 : index
      %43 = vector.load %arg8[%c0_14, %c0_15] : memref<8x1xf32, #tpu.memory_space<vmem>>, vector<8x1xf32>
      %cst_16 = arith.constant 4.8828125E-4 : f32
      %44 = vector.broadcast %cst_16 : f32 to vector<8x1xf32>
      %45 = arith.mulf %43, %44 : vector<8x1xf32>
      %c0_17 = arith.constant 0 : index
      %c0_18 = arith.constant 0 : index
      %46 = vector.load %arg9[%c0_17, %c0_18] : memref<8x1xf32, #tpu.memory_space<vmem>>, vector<8x1xf32>
      %c0_19 = arith.constant 0 : index
      %c0_20 = arith.constant 0 : index
      %47 = vector.load %arg10[%c0_19, %c0_20] : memref<8x1xf32, #tpu.memory_space<vmem>>, vector<8x1xf32>
      %cst_21 = arith.constant 1.024000e+03 : f32
      %48 = vector.broadcast %cst_21 : f32 to vector<8x1xf32>
      %49 = arith.mulf %48, %47 : vector<8x1xf32>
      %50 = arith.addf %46, %49 : vector<8x1xf32>
      %cst_22 = arith.constant 4.8828125E-4 : f32
      %51 = vector.broadcast %cst_22 : f32 to vector<8x1xf32>
      %52 = arith.mulf %50, %51 : vector<8x1xf32>
      %53 = arith.mulf %45, %45 : vector<8x1xf32>
      %54 = arith.subf %52, %53 : vector<8x1xf32>
      %cst_23 = arith.constant 0.000000e+00 : f32
      %55 = vector.broadcast %cst_23 : f32 to vector<8x1xf32>
      %56 = arith.maximumf %54, %55 : vector<8x1xf32>
      %c0_24 = arith.constant 0 : index
      %c0_25 = arith.constant 0 : index
      %57 = vector.load %arg5[%c0_24, %c0_25] : memref<8x1xf32, #tpu.memory_space<vmem>>, vector<8x1xf32>
      %cst_26 = arith.constant 9.99999974E-6 : f32
      %58 = vector.broadcast %cst_26 : f32 to vector<8x1xf32>
      %59 = arith.addf %56, %58 : vector<8x1xf32>
      %60 = math.rsqrt %59 : vector<8x1xf32>
      %61 = arith.mulf %57, %60 : vector<8x1xf32>
      %c0_27 = arith.constant 0 : index
      %c0_28 = arith.constant 0 : index
      %62 = vector.load %arg6[%c0_27, %c0_28] : memref<8x1xf32, #tpu.memory_space<vmem>>, vector<8x1xf32>
      %63 = arith.mulf %45, %61 : vector<8x1xf32>
      %64 = arith.subf %62, %63 : vector<8x1xf32>
      %65 = vector.broadcast %61 : vector<8x1xf32> to vector<8x256xf32>
      %66 = arith.mulf %22, %65 : vector<8x256xf32>
      %67 = vector.broadcast %64 : vector<8x1xf32> to vector<8x256xf32>
      %68 = arith.addf %66, %67 : vector<8x256xf32>
      %cst_29 = arith.constant 0.000000e+00 : f32
      %69 = vector.broadcast %cst_29 : f32 to vector<8x256xf32>
      %70 = arith.maximumf %68, %69 : vector<8x256xf32>
      %c0_30 = arith.constant 0 : index
      %c0_31 = arith.constant 0 : index
      %c0_32 = arith.constant 0 : index
      %c0_33 = arith.constant 0 : index
      %71 = vector.load %arg7[%c0_30, %c0_31, %c0_32, %c0_33] : memref<1x4x8x256xf32, #tpu.memory_space<vmem>>, vector<1x1x8x256xf32>
      %72 = vector.shape_cast %71 : vector<1x1x8x256xf32> to vector<8x256xf32>
      %73 = vector.shape_cast %70 : vector<8x256xf32> to vector<1x1x8x256xf32>
      tpu.vector_store %arg7[%c0_30, %c0_31, %c0_32, %c0_33], %73 {strides = array<i32>} : memref<1x4x8x256xf32, #tpu.memory_space<vmem>>, vector<1x1x8x256xf32>,
      %74 = vector.broadcast %61 : vector<8x1xf32> to vector<8x256xf32>
      %75 = arith.mulf %25, %74 : vector<8x256xf32>
      %76 = vector.broadcast %64 : vector<8x1xf32> to vector<8x256xf32>
      %77 = arith.addf %75, %76 : vector<8x256xf32>
      %cst_34 = arith.constant 0.000000e+00 : f32
      %78 = vector.broadcast %cst_34 : f32 to vector<8x256xf32>
      %79 = arith.maximumf %77, %78 : vector<8x256xf32>
      %c0_35 = arith.constant 0 : index
      %c1 = arith.constant 1 : index
      %c0_36 = arith.constant 0 : index
      %c0_37 = arith.constant 0 : index
      %80 = vector.load %arg7[%c0_35, %c1, %c0_36, %c0_37] : memref<1x4x8x256xf32, #tpu.memory_space<vmem>>, vector<1x1x8x256xf32>
      %81 = vector.shape_cast %80 : vector<1x1x8x256xf32> to vector<8x256xf32>
      %82 = vector.shape_cast %79 : vector<8x256xf32> to vector<1x1x8x256xf32>
      tpu.vector_store %arg7[%c0_35, %c1, %c0_36, %c0_37], %82 {strides = array<i32>} : memref<1x4x8x256xf32, #tpu.memory_space<vmem>>, vector<1x1x8x256xf32>,
      %83 = vector.broadcast %61 : vector<8x1xf32> to vector<8x256xf32>
      %84 = arith.mulf %28, %83 : vector<8x256xf32>
      %85 = vector.broadcast %64 : vector<8x1xf32> to vector<8x256xf32>
      %86 = arith.addf %84, %85 : vector<8x256xf32>
      %cst_38 = arith.constant 0.000000e+00 : f32
      %87 = vector.broadcast %cst_38 : f32 to vector<8x256xf32>
      %88 = arith.maximumf %86, %87 : vector<8x256xf32>
      %c0_39 = arith.constant 0 : index
      %c2 = arith.constant 2 : index
      %c0_40 = arith.constant 0 : index
      %c0_41 = arith.constant 0 : index
      %89 = vector.load %arg7[%c0_39, %c2, %c0_40, %c0_41] : memref<1x4x8x256xf32, #tpu.memory_space<vmem>>, vector<1x1x8x256xf32>
      %90 = vector.shape_cast %89 : vector<1x1x8x256xf32> to vector<8x256xf32>
      %91 = vector.shape_cast %88 : vector<8x256xf32> to vector<1x1x8x256xf32>
      tpu.vector_store %arg7[%c0_39, %c2, %c0_40, %c0_41], %91 {strides = array<i32>} : memref<1x4x8x256xf32, #tpu.memory_space<vmem>>, vector<1x1x8x256xf32>,
      %92 = vector.broadcast %61 : vector<8x1xf32> to vector<8x256xf32>
      %93 = arith.mulf %31, %92 : vector<8x256xf32>
      %94 = vector.broadcast %64 : vector<8x1xf32> to vector<8x256xf32>
      %95 = arith.addf %93, %94 : vector<8x256xf32>
      %cst_42 = arith.constant 0.000000e+00 : f32
      %96 = vector.broadcast %cst_42 : f32 to vector<8x256xf32>
      %97 = arith.maximumf %95, %96 : vector<8x256xf32>
      %c0_43 = arith.constant 0 : index
      %c3 = arith.constant 3 : index
      %c0_44 = arith.constant 0 : index
      %c0_45 = arith.constant 0 : index
      %98 = vector.load %arg7[%c0_43, %c3, %c0_44, %c0_45] : memref<1x4x8x256xf32, #tpu.memory_space<vmem>>, vector<1x1x8x256xf32>
      %99 = vector.shape_cast %98 : vector<1x1x8x256xf32> to vector<8x256xf32>
      %100 = vector.shape_cast %97 : vector<8x256xf32> to vector<1x1x8x256xf32>
      tpu.vector_store %arg7[%c0_43, %c3, %c0_44, %c0_45], %100 {strides = array<i32>} : memref<1x4x8x256xf32, #tpu.memory_space<vmem>>, vector<1x1x8x256xf32>,
    } else {
    }
    return
  }
  func.func @transform_0(%arg0: i32, %arg1: i32) -> (i32, i32, i32) {
    %c0_i32 = arith.constant 0 : i32
    %c0_i32_0 = arith.constant 0 : i32
    %c0_i32_1 = arith.constant 0 : i32
    return %arg1, %c0_i32, %c0_i32_0 : i32, i32, i32
  }
  func.func @transform_1(%arg0: i32, %arg1: i32) -> (i32, i32) {
    %c0_i32 = arith.constant 0 : i32
    %c0_i32_0 = arith.constant 0 : i32
    %c0_i32_1 = arith.constant 0 : i32
    return %c0_i32, %c0_i32_0 : i32, i32
  }
  func.func @transform_2(%arg0: i32, %arg1: i32) -> (i32, i32) {
    %c0_i32 = arith.constant 0 : i32
    %c0_i32_0 = arith.constant 0 : i32
    %c0_i32_1 = arith.constant 0 : i32
    return %c0_i32, %c0_i32_0 : i32, i32
  }
  func.func @transform_3(%arg0: i32, %arg1: i32) -> (i32, i32) {
    %c0_i32 = arith.constant 0 : i32
    %c0_i32_0 = arith.constant 0 : i32
    %c0_i32_1 = arith.constant 0 : i32
    return %c0_i32, %c0_i32_0 : i32, i32
  }
  func.func @transform_4(%arg0: i32, %arg1: i32) -> (i32, i32) {
    %c0_i32 = arith.constant 0 : i32
    %c0_i32_0 = arith.constant 0 : i32
    %c0_i32_1 = arith.constant 0 : i32
    return %c0_i32, %c0_i32_0 : i32, i32
  }
  func.func @transform_5(%arg0: i32, %arg1: i32) -> (i32, i32, i32, i32) {
    %0 = arith.muli %arg1, %arg0 : i32
    %c0_i32 = arith.constant 0 : i32
    %c0_i32_0 = arith.constant 0 : i32
    %c0_i32_1 = arith.constant 0 : i32
    %c0_i32_2 = arith.constant 0 : i32
    return %0, %c0_i32, %c0_i32_0, %c0_i32_1 : i32, i32, i32, i32
  }
}

</mosaic_0001>

<llo_original>
// kernel: upsampling_conv_bn_relu.1
$region0: #{upsampling_conv_bn_relu.1}
  #allocation0 [shape = 'u32[]', space=smem, size = 0x4, offset = 0x4, fixed_abs, tag = 'smem constant byte address 0x4 - core index']
  #allocation1 [shape = 'u32[144,128]{1,0:T(1,128)}', space=vmem, size = 0x12000, scoped, tag = 'internal scratch']
  #allocation2 [shape = 'f32[8,1]{1,0:T(8,128)}', space=vmem, size = 0x1000, scoped, tag = 'scratch operand']
  #allocation3 [shape = 'f32[8,1]{1,0:T(8,128)}', space=vmem, size = 0x1000, scoped, tag = 'scratch operand']
  #allocation4 [shape = 'f32[8,1]{1,0:T(8,128)}', space=vmem, size = 0x1000, scoped, tag = 'scratch operand']
  %s0 = inlined_call_operand.vmem [shape: f32[2,4,384], index: 0, kind: input, shape index: {}]
  %s1 = inlined_call_operand.vmem [shape: f32[4,256], index: 1, kind: input, shape index: {}]
  %s2 = inlined_call_operand.vmem [shape: bf16[8,36], index: 2, kind: input, shape index: {}]
  %s3 = inlined_call_operand.vmem [shape: f32[8,1], index: 3, kind: input, shape index: {}]
  %s4 = inlined_call_operand.vmem [shape: f32[8,1], index: 4, kind: input, shape index: {}]
  %s5 = inlined_call_operand.vmem [shape: f32[2,4,8,256], index: 5, kind: output, shape index: {}]
  %s6 = sld [smem:[#allocation0]]
  $region65: #{upsampling_conv_bn_relu.1} parent=0
    _
  %s8 = ssub.s32 1, %s6
  %s9 = scalar_select 0, %s8, %s6
  loop: start=0, step=1, limit=6
  $region2: #{upsampling_conv_bn_relu.1} parent=0 // loop_pre_header
    _
  $region3: #{upsampling_conv_bn_relu.1} parent=0 // loop_header
    %s11 = sphi 0, %s15
    %p12 = scmp.ge.s32.totalorder %s11, 6
    %s18 = sphi 0, %s30
    %s19 = sphi 0, %s26
    %s20 = sphi 0, %s18
    %s21 = sphi 0, %s19
    %s22 = sphi 0, %s20
    %s23 = sphi 0, %s21
    %s33 = sphi 0, %s35
    %s36 = sphi 0, %s33
    %s37 = sphi 0, %s36
    %s53 = sphi 0, %s37
    %s57 = sphi 0, %s57
    %s59 = sphi 0, %s57
    %s60 = sphi 0, %s59
    %s74 = sphi 0, %s60
    %s78 = sphi 0, %s78
    %s80 = sphi 0, %s78
    %s81 = sphi 0, %s80
    %s95 = sphi 0, %s81
    %s99 = sphi 0, %s99
    %s101 = sphi 0, %s99
    %s102 = sphi 0, %s101
    %s116 = sphi 0, %s102
    %s120 = sphi 0, %s120
    %s122 = sphi 0, %s120
    %s123 = sphi 0, %s122
    %s137 = sphi 0, %s123
    %s145 = sphi 0, %s147
    %s148 = sphi 0, %s145
    %s149 = sphi 0, %s148
    %s165 = sphi 0, %s149
  $region4: #{upsampling_conv_bn_relu.1} parent=0 // loop_header_branch
    %14 = sbr.rel (%p12) target = $region8
  $region5: #{upsampling_conv_bn_relu.1} parent=0 // loop_body
    %s16 = ssub.s32 %s11, 1
    %s17 = ssub.s32 %s11, 2
    %s24 = sadd.s32 1, %s19
    %p25 = scmp.ge.s32.totalorder %s24, 2
    %s26 = scalar_select %p25, 0, %s24
    %s27 = sadd.s32 1, %s18
    %s28 = scalar_select %p25, %s27, %s18
    %p29 = scmp.ge.s32.totalorder %s28, 2
    %s30 = scalar_select %p29, 0, %s28
    %s31 = ssub.s32 %s19, %s26
    %p32 = scmp.eq.s32.totalorder %s31, 0
    %s34 = sadd.s32 %s33, 1
    %s35 = scalar_select %p32, %s33, %s34
    %p38 = pneg %p32
    %p39 = scmp.eq.s32.totalorder %s11, 3
    %p40 = por %p38, %p39
    %p41 = scmp.ne.s32.totalorder %s33, %s36
    %p42 = scmp.eq.s32.totalorder %s11, 0
    %p43 = por %p41, %p42
    %p44 = scmp.ne.s32.totalorder %s33, %s36
    %p45 = scmp.eq.s32.totalorder %s16, 3
    %p46 = por %p44, %p45
    %p47 = scmp.ne.s32.totalorder %s36, %s37
    %p48 = scmp.eq.s32.totalorder %s16, 0
    %p49 = por %p47, %p48
    %p50 = scmp.ne.s32.totalorder %s36, %s37
    %p51 = scmp.eq.s32.totalorder %s17, 3
    %p52 = por %p50, %p51
    %p54 = scmp.ne.s32.totalorder %s37, %s53
    %p55 = scmp.eq.s32.totalorder %s17, 0
    %p56 = por %p54, %p55
    %s58 = sadd.s32 %s57, 1
    %p61 = scmp.eq.s32.totalorder %s11, 3
    %p62 = scmp.ne.s32.totalorder %s57, %s59
    %p63 = scmp.eq.s32.totalorder %s11, 0
    %p64 = por %p62, %p63
    %p65 = scmp.ne.s32.totalorder %s57, %s59
    %p66 = scmp.eq.s32.totalorder %s16, 3
    %p67 = por %p65, %p66
    %p68 = scmp.ne.s32.totalorder %s59, %s60
    %p69 = scmp.eq.s32.totalorder %s16, 0
    %p70 = por %p68, %p69
    %p71 = scmp.ne.s32.totalorder %s59, %s60
    %p72 = scmp.eq.s32.totalorder %s17, 3
    %p73 = por %p71, %p72
    %p75 = scmp.ne.s32.totalorder %s60, %s74
    %p76 = scmp.eq.s32.totalorder %s17, 0
    %p77 = por %p75, %p76
    %s79 = sadd.s32 %s78, 1
    %p82 = scmp.eq.s32.totalorder %s11, 3
    %p83 = scmp.ne.s32.totalorder %s78, %s80
    %p84 = scmp.eq.s32.totalorder %s11, 0
    %p85 = por %p83, %p84
    %p86 = scmp.ne.s32.totalorder %s78, %s80
    %p87 = scmp.eq.s32.totalorder %s16, 3
    %p88 = por %p86, %p87
    %p89 = scmp.ne.s32.totalorder %s80, %s81
    %p90 = scmp.eq.s32.totalorder %s16, 0
    %p91 = por %p89, %p90
    %p92 = scmp.ne.s32.totalorder %s80, %s81
    %p93 = scmp.eq.s32.totalorder %s17, 3
    %p94 = por %p92, %p93
    %p96 = scmp.ne.s32.totalorder %s81, %s95
    %p97 = scmp.eq.s32.totalorder %s17, 0
    %p98 = por %p96, %p97
    %s100 = sadd.s32 %s99, 1
    %p103 = scmp.eq.s32.totalorder %s11, 3
    %p104 = scmp.ne.s32.totalorder %s99, %s101
    %p105 = scmp.eq.s32.totalorder %s11, 0
    %p106 = por %p104, %p105
    %p107 = scmp.ne.s32.totalorder %s99, %s101
    %p108 = scmp.eq.s32.totalorder %s16, 3
    %p109 = por %p107, %p108
    %p110 = scmp.ne.s32.totalorder %s101, %s102
    %p111 = scmp.eq.s32.totalorder %s16, 0
    %p112 = por %p110, %p111
    %p113 = scmp.ne.s32.totalorder %s101, %s102
    %p114 = scmp.eq.s32.totalorder %s17, 3
    %p115 = por %p113, %p114
    %p117 = scmp.ne.s32.totalorder %s102, %s116
    %p118 = scmp.eq.s32.totalorder %s17, 0
    %p119 = por %p117, %p118
    %s121 = sadd.s32 %s120, 1
    %p124 = scmp.eq.s32.totalorder %s11, 3
    %p125 = scmp.ne.s32.totalorder %s120, %s122
    %p126 = scmp.eq.s32.totalorder %s11, 0
    %p127 = por %p125, %p126
    %p128 = scmp.ne.s32.totalorder %s120, %s122
    %p129 = scmp.eq.s32.totalorder %s16, 3
    %p130 = por %p128, %p129
    %p131 = scmp.ne.s32.totalorder %s122, %s123
    %p132 = scmp.eq.s32.totalorder %s16, 0
    %p133 = por %p131, %p132
    %p134 = scmp.ne.s32.totalorder %s122, %s123
    %p135 = scmp.eq.s32.totalorder %s17, 3
    %p136 = por %p134, %p135
    %p138 = scmp.ne.s32.totalorder %s123, %s137
    %p139 = scmp.eq.s32.totalorder %s17, 0
    %p140 = por %p138, %p139
    %s141 = smul.u32 %s19, %s18
    %s142 = smul.u32 %s26, %s30
    %s143 = ssub.s32 %s141, %s142
    %p144 = scmp.eq.s32.totalorder %s143, 0
    %s146 = sadd.s32 %s145, 1
    %s147 = scalar_select %p144, %s145, %s146
    %p150 = pneg %p144
    %p151 = scmp.eq.s32.totalorder %s11, 3
    %p152 = por %p150, %p151
    %p153 = scmp.ne.s32.totalorder %s145, %s148
    %p154 = scmp.eq.s32.totalorder %s11, 0
    %p155 = por %p153, %p154
    %p156 = scmp.ne.s32.totalorder %s145, %s148
    %p157 = scmp.eq.s32.totalorder %s16, 3
    %p158 = por %p156, %p157
    %p159 = scmp.ne.s32.totalorder %s148, %s149
    %p160 = scmp.eq.s32.totalorder %s16, 0
    %p161 = por %p159, %p160
    %p162 = scmp.ne.s32.totalorder %s148, %s149
    %p163 = scmp.eq.s32.totalorder %s17, 3
    %p164 = por %p162, %p163
    %p166 = scmp.ne.s32.totalorder %s149, %s165
    %p167 = scmp.eq.s32.totalorder %s17, 0
    %p168 = por %p166, %p167
    %p169 = scmp.le.s32.totalorder 1, %s11
    %p170 = scmp.lt.s32.totalorder %s11, 5
    %p171 = pnand %p169, %p170
    %p172 = pneg %p171
    // Predicated region
    $region9: #{upsampling_conv_bn_relu.1} parent=5 // pred_check
      _
    $region10: #{upsampling_conv_bn_relu.1} parent=5 // pred_check_branch
      %174 = sbr.rel (%p171) target = $region12
    $region11: #{upsampling_conv_bn_relu.1} parent=5 // pred_region
      %s175 = ssub.s32 %s11, 1
      // Predicated region
      $region13: #{upsampling_conv_bn_relu.1} parent=11 // pred_check
        %p176 = pneg %p70
      $region14: #{upsampling_conv_bn_relu.1} parent=11 // pred_check_branch
        %178 = sbr.rel (%p176) target = $region16
      $region15: #{upsampling_conv_bn_relu.1} parent=11 // pred_region
        _
      $region16: #{upsampling_conv_bn_relu.1} parent=11 // pred_fallthru
        _
      // Predicated region
      $region17: #{upsampling_conv_bn_relu.1} parent=11 // pred_check
        %p179 = pneg %p91
      $region18: #{upsampling_conv_bn_relu.1} parent=11 // pred_check_branch
        %181 = sbr.rel (%p179) target = $region20
      $region19: #{upsampling_conv_bn_relu.1} parent=11 // pred_region
        _
      $region20: #{upsampling_conv_bn_relu.1} parent=11 // pred_fallthru
        _
      // Predicated region
      $region21: #{upsampling_conv_bn_relu.1} parent=11 // pred_check
        %p182 = pneg %p112
      $region22: #{upsampling_conv_bn_relu.1} parent=11 // pred_check_branch
        %184 = sbr.rel (%p182) target = $region24
      $region23: #{upsampling_conv_bn_relu.1} parent=11 // pred_region
        _
      $region24: #{upsampling_conv_bn_relu.1} parent=11 // pred_fallthru
        _
      // Predicated region
      $region25: #{upsampling_conv_bn_relu.1} parent=11 // pred_check
        %p185 = pneg %p133
      $region26: #{upsampling_conv_bn_relu.1} parent=11 // pred_check_branch
        %187 = sbr.rel (%p185) target = $region28
      $region27: #{upsampling_conv_bn_relu.1} parent=11 // pred_region
        _
      $region28: #{upsampling_conv_bn_relu.1} parent=11 // pred_fallthru
        _
    $region12: #{upsampling_conv_bn_relu.1} parent=5 // pred_fallthru
      _
    %p188 = scmp.lt.s32.totalorder %s11, 4
    // Predicated region
    $region29: #{upsampling_conv_bn_relu.1} parent=5 // pred_check
      %p189 = pneg %p188
    $region30: #{upsampling_conv_bn_relu.1} parent=5 // pred_check_branch
      %191 = sbr.rel (%p189) target = $region32
    $region31: #{upsampling_conv_bn_relu.1} parent=5 // pred_region
      // Predicated region
      $region33: #{upsampling_conv_bn_relu.1} parent=31 // pred_check
        %p192 = pneg %p43
      $region34: #{upsampling_conv_bn_relu.1} parent=31 // pred_check_branch
        %194 = sbr.rel (%p192) target = $region36
      $region35: #{upsampling_conv_bn_relu.1} parent=31 // pred_region
        %p195 = scmp.lt.s32.totalorder %s19, 1
        %s196 = scalar_select %p195, %s19, 1
        %s197 = smul.addr %s196, 3
        %s198 = smul.addr %s197, 4
        %s199 = scalar_lea.vmem %s0, %s198
      $region36: #{upsampling_conv_bn_relu.1} parent=31 // pred_fallthru
        _
    $region32: #{upsampling_conv_bn_relu.1} parent=5 // pred_fallthru
      _
    %p200 = scmp.le.s32.totalorder 1, %s11
    %p201 = scmp.lt.s32.totalorder %s11, 5
    %p202 = pnand %p200, %p201
    %p203 = pneg %p202
    // Predicated region
    $region37: #{upsampling_conv_bn_relu.1} parent=5 // pred_check
      _
    $region38: #{upsampling_conv_bn_relu.1} parent=5 // pred_check_branch
      %205 = sbr.rel (%p202) target = $region40
    $region39: #{upsampling_conv_bn_relu.1} parent=5 // pred_region
      %s206 = ssub.s32 %s11, 1
      %p207 = scmp.lt.s32.totalorder %s21, 1
      %s208 = scalar_select %p207, %s21, 1
      %s209 = smul.addr %s208, 3
      %s210 = smul.addr %s209, 4
      %s211 = scalar_lea.vmem %s0, %s210
      %p212 = pneg %p49
      %p213 = pneg %p46
      %p214 = pneg %p70
      %p215 = pneg %p67
      %p216 = pneg %p91
      %p217 = pneg %p88
      %p218 = pneg %p112
      %p219 = pneg %p109
      %p220 = pneg %p133
      %p221 = pneg %p130
      %p222 = pneg %p161
      %p223 = pneg %p158
      %s224 = smul.u32 %s21, %s20
      %p225 = scmp.lt.s32.totalorder %s224, 1
      %s226 = scalar_select %p225, %s224, 1
      %s227 = smul.addr %s226, 8
      %s228 = smul.addr %s227, 8
      %s229 = scalar_lea.vmem %s5, %s228
      %p230 = scmp.lt.s32.totalorder %s21, 1
      %s231 = scalar_select %p230, %s21, 1
      %s232 = smul.addr %s231, 3
      %s233 = smul.addr %s232, 4
      %s234 = scalar_lea.vmem %s0, %s233
      %s235 = smul.u32 %s21, %s20
      %p236 = scmp.lt.s32.totalorder %s235, 1
      %s237 = scalar_select %p236, %s235, 1
      %s238 = smul.addr %s237, 8
      %s239 = smul.addr %s238, 8
      %s240 = scalar_lea.vmem %s5, %s239
      %s241 = smul.u32 %s21, %s20
      %v243 = vld [vmem:[%s234] sm:$0xff]
      %v244 = vld [vmem:[%s234 + $0x8] sm:$0xf]
      %v245 = vld [vmem:[%s1] sm:$0xff]
      %v247 = vcombine.high %v243, %v243
      %v249 = vpack.c.bf16 %v243, %v243
      %v250 = vpack.c.bf16 %v247, %v247
      %v252 = vlaneseq
      %v253 = vshrl.u32 %v252, 7
      %v254 = vsub.s32 1, %v253
      %v255 = vrot.slane %v245, %v254
      %v256 = vlaneseq
      %v257 = vshrl.u32 %v256, 7
      %v258 = vsub.s32 5, %v257
      %v259 = vrot.slane %v245, %v258
      %v262 = vlaneseq
      %v263 = vshrl.u32 %v262, 7
      %v264 = vsub.s32 1, %v263
      %v265 = vrot.slane %v255, %v264
      %v266 = vlaneseq
      %v267 = vshrl.u32 %v266, 7
      %v268 = vsub.s32 1, %v267
      %v269 = vrot.slane %v259, %v268
      %v272 = vcombine.low %v265, %v269
      %273 = vrot.lane.b32.xlu0 %v272, 1
      %v274 = vpop.permute.xlu0 %273
      %v275 = vrot.slane %v274, 4
      %vm276 = vcmask 7168
      %v277 = vsel %vm276, %v275, %v274
      %v280 = vmul.f32 %v243, %v277
      %v281 = vmul.f32 %v244, %v275
      %v283 = vcombine.high %v280, %v280
      %v285 = vpack.c.bf16 %v280, %v280
      %v286 = vpack.c.bf16 %v283, %v283
      %v287 = vpack.c.bf16 %v281, %v281
      %v288 = vlaneseq
      %v289 = vshrl.u32 %v288, 7
      %v290 = vsub.s32 2, %v289
      %v291 = vrot.slane %v245, %v290
      %v292 = vlaneseq
      %v293 = vshrl.u32 %v292, 7
      %v294 = vsub.s32 6, %v293
      %v295 = vrot.slane %v245, %v294
      %v298 = vlaneseq
      %v299 = vshrl.u32 %v298, 7
      %v300 = vsub.s32 2, %v299
      %v301 = vrot.slane %v291, %v300
      %v302 = vlaneseq
      %v303 = vshrl.u32 %v302, 7
      %v304 = vsub.s32 2, %v303
      %v305 = vrot.slane %v295, %v304
      %v308 = vcombine.low %v301, %v305
      %309 = vrot.lane.b32.xlu0 %v308, 16
      %v310 = vpop.permute.xlu0 %309
      %v311 = vrot.slane %v310, 4
      %vm312 = vcmask 130048
      %v313 = vsel %vm312, %v311, %v310
      %v316 = vmul.f32 %v243, %v313
      %v317 = vmul.f32 %v244, %v311
      %v319 = vcombine.high %v316, %v316
      %v321 = vpack.c.bf16 %v316, %v316
      %v322 = vpack.c.bf16 %v319, %v319
      %v323 = vpack.c.bf16 %v317, %v317
      %v324 = vlaneseq
      %v325 = vshrl.u32 %v324, 7
      %v326 = vsub.s32 3, %v325
      %v327 = vrot.slane %v245, %v326
      %v328 = vlaneseq
      %v329 = vshrl.u32 %v328, 7
      %v330 = vsub.s32 7, %v329
      %v331 = vrot.slane %v245, %v330
      %v334 = vlaneseq
      %v335 = vshrl.u32 %v334, 7
      %v336 = vsub.s32 3, %v335
      %v337 = vrot.slane %v327, %v336
      %v338 = vlaneseq
      %v339 = vshrl.u32 %v338, 7
      %v340 = vsub.s32 3, %v339
      %v341 = vrot.slane %v331, %v340
      %v344 = vcombine.low %v337, %v341
      %345 = vrot.lane.b32.xlu0 %v344, 17
      %v346 = vpop.permute.xlu0 %345
      %v347 = vrot.slane %v346, 4
      %vm348 = vcmask 138240
      %v349 = vsel %vm348, %v347, %v346
      %v352 = vmul.f32 %v243, %v349
      %v353 = vmul.f32 %v244, %v347
      %v355 = vcombine.high %v352, %v352
      %v357 = vpack.c.bf16 %v352, %v352
      %v358 = vpack.c.bf16 %v355, %v355
      %v359 = vpack.c.bf16 %v353, %v353
      %v360 = vld [vmem:[%s2] sm:$0xf]
      %vm361 = vcmask 31744
      %v363 = vsel %vm361, %v360, 0
      %vm365 = vcmask 1041408
      %v367 = vsel %vm365, %v249, 0
      %v370 = vsel %vm365, %v250, 0
      %372 = vmatprep.subr.bf16.mxu0 %v370
      %373 = vmatpush1.bf16.msra.mxu0 %v367
      %374 = vmatprep.subr.bf16.mxu0 0
      %375 = vmatpush1.bf16.msra.mxu0 0
      %376 = vmatprep.subr.bf16.mxu0 0
      %377 = vmatpush1.bf16.msra.mxu0 0
      %378 = vmatprep.subr.bf16.mxu0 0
      %379 = vmatpush1.bf16.msra.mxu0 0
      %380 = vmatprep.subr.bf16.mxu0 0
      %381 = vmatpush1.bf16.msra.mxu0 0
      %382 = vmatprep.subr.bf16.mxu0 0
      %383 = vmatpush1.bf16.msra.mxu0 0
      %384 = vmatprep.subr.bf16.mxu0 0
      %385 = vmatpush1.bf16.msra.mxu0 0
      %386 = vmatprep.subr.bf16.mxu0 0
      %387 = vmatpush1.bf16.msra.mxu0 0
      %388 = vmatprep.subr.bf16.mxu0 0
      %389 = vmatpush1.bf16.msra.mxu0 0
      %390 = vmatprep.subr.bf16.mxu0 0
      %391 = vmatpush1.bf16.msra.mxu0 0
      %392 = vmatprep.subr.bf16.mxu0 0
      %393 = vmatpush1.bf16.msra.mxu0 0
      %394 = vmatprep.subr.bf16.mxu0 0
      %395 = vmatpush1.bf16.msra.mxu0 0
      %396 = vmatprep.subr.bf16.mxu0 0
      %397 = vmatpush1.bf16.msra.mxu0 0
      %398 = vmatprep.subr.bf16.mxu0 0
      %399 = vmatpush1.bf16.msra.mxu0 0
      %400 = vmatprep.subr.bf16.mxu0 0
      %401 = vmatpush1.bf16.msra.mxu0 0
      %402 = vmatprep.subr.bf16.mxu0 0
      %403 = vmatpush1.bf16.msra.mxu0 0
      %404 = vmatprep.mubr.bf16.mxu0 0
      %405 = vmatmul.mubr.bf16.gmra.mrb[0].mxu0 %v363
      %v406 = vpop.f32.mrb[0].mxu0
      %v407 = vadd.f32 0.0, %v406
      %v408 = vpop.f32.mrb[0].mxu0
      %v409 = vadd.f32 0.0, %v408
      %v410 = vpop.f32.mrb[0].mxu0
      %v411 = vpop.f32.mrb[0].mxu0
      %412 = vdwg.mxu0
      %v416 = vrot.slane %v285, 6
      %v417 = vrot.slane %v286, 6
      %v418 = vrot.slane %v287, 6
      %419 = vrot.lane.b32.xlu0 %v416, 127
      %v420 = vpop.permute.xlu0 %419
      %421 = vrot.lane.b32.xlu0 %v417, 127
      %v422 = vpop.permute.xlu0 %421
      %423 = vrot.lane.b32.xlu0 %v418, 127
      %v424 = vpop.permute.xlu0 %423
      %vm425 = vcmask 1039360
      %v426 = vsel %vm425, %v420, %v422
      %v427 = vsel %vm425, %v422, %v424
      %v429 = vsel %vm365, %v249, %v426
      %v431 = vsel %vm365, %v250, %v427
      %v433 = vunpack.c.l.b16 %v360
      %v434 = vpack.c.b16 %v433, %v433
      %435 = vrot.lane.b32.xlu0 %v434, 124
      %v436 = vpop.permute.xlu0 %435
      %vm437 = vcmask 64512
      %v439 = vsel %vm437, %v436, 0
      %vm441 = vcmask 1043456
      %v442 = vsel %vm441, %v429, 0
      %v444 = vsel %vm441, %v431, 0
      %446 = vmatprep.subr.bf16.mxu0 %v444
      %447 = vmatpush1.bf16.msra.mxu0 %v442
      %448 = vmatprep.subr.bf16.mxu0 0
      %449 = vmatpush1.bf16.msra.mxu0 0
      %450 = vmatprep.subr.bf16.mxu0 0
      %451 = vmatpush1.bf16.msra.mxu0 0
      %452 = vmatprep.subr.bf16.mxu0 0
      %453 = vmatpush1.bf16.msra.mxu0 0
      %454 = vmatprep.subr.bf16.mxu0 0
      %455 = vmatpush1.bf16.msra.mxu0 0
      %456 = vmatprep.subr.bf16.mxu0 0
      %457 = vmatpush1.bf16.msra.mxu0 0
      %458 = vmatprep.subr.bf16.mxu0 0
      %459 = vmatpush1.bf16.msra.mxu0 0
      %460 = vmatprep.subr.bf16.mxu0 0
      %461 = vmatpush1.bf16.msra.mxu0 0
      %462 = vmatprep.subr.bf16.mxu0 0
      %463 = vmatpush1.bf16.msra.mxu0 0
      %464 = vmatprep.subr.bf16.mxu0 0
      %465 = vmatpush1.bf16.msra.mxu0 0
      %466 = vmatprep.subr.bf16.mxu0 0
      %467 = vmatpush1.bf16.msra.mxu0 0
      %468 = vmatprep.subr.bf16.mxu0 0
      %469 = vmatpush1.bf16.msra.mxu0 0
      %470 = vmatprep.subr.bf16.mxu0 0
      %471 = vmatpush1.bf16.msra.mxu0 0
      %472 = vmatprep.subr.bf16.mxu0 0
      %473 = vmatpush1.bf16.msra.mxu0 0
      %474 = vmatprep.subr.bf16.mxu0 0
      %475 = vmatpush1.bf16.msra.mxu0 0
      %476 = vmatprep.subr.bf16.mxu0 0
      %477 = vmatpush1.bf16.msra.mxu0 0
      %478 = vmatprep.mubr.bf16.mxu0 0
      %479 = vmatmul.mubr.bf16.gmra.mrb[0].mxu0 %v439
      %v480 = vpop.f32.mrb[0].mxu0
      %v481 = vadd.f32 0.0, %v480
      %v482 = vpop.f32.mrb[0].mxu0
      %v483 = vadd.f32 0.0, %v482
      %v484 = vpop.f32.mrb[0].mxu0
      %v485 = vpop.f32.mrb[0].mxu0
      %486 = vdwg.mxu0
      %v490 = vrot.slane %v321, 6
      %v491 = vrot.slane %v322, 6
      %v492 = vrot.slane %v323, 6
      %493 = vrot.lane.b32.xlu0 %v490, 112
      %v494 = vpop.permute.xlu0 %493
      %495 = vrot.lane.b32.xlu0 %v491, 112
      %v496 = vpop.permute.xlu0 %495
      %497 = vrot.lane.b32.xlu0 %v492, 112
      %v498 = vpop.permute.xlu0 %497
      %vm499 = vcmask 916480
      %v500 = vsel %vm499, %v494, %v496
      %v501 = vsel %vm499, %v496, %v498
      %v503 = vsel %vm365, %v249, %v500
      %v505 = vsel %vm365, %v250, %v501
      %506 = vrot.lane.b32.xlu0 %v434, 116
      %v507 = vpop.permute.xlu0 %506
      %v509 = vsel %vm437, %v507, 0
      %v511 = vsel %vm441, %v503, 0
      %v513 = vsel %vm441, %v505, 0
      %515 = vmatprep.subr.bf16.mxu0 %v513
      %516 = vmatpush1.bf16.msra.mxu0 %v511
      %517 = vmatprep.subr.bf16.mxu0 0
      %518 = vmatpush1.bf16.msra.mxu0 0
      %519 = vmatprep.subr.bf16.mxu0 0
      %520 = vmatpush1.bf16.msra.mxu0 0
      %521 = vmatprep.subr.bf16.mxu0 0
      %522 = vmatpush1.bf16.msra.mxu0 0
      %523 = vmatprep.subr.bf16.mxu0 0
      %524 = vmatpush1.bf16.msra.mxu0 0
      %525 = vmatprep.subr.bf16.mxu0 0
      %526 = vmatpush1.bf16.msra.mxu0 0
      %527 = vmatprep.subr.bf16.mxu0 0
      %528 = vmatpush1.bf16.msra.mxu0 0
      %529 = vmatprep.subr.bf16.mxu0 0
      %530 = vmatpush1.bf16.msra.mxu0 0
      %531 = vmatprep.subr.bf16.mxu0 0
      %532 = vmatpush1.bf16.msra.mxu0 0
      %533 = vmatprep.subr.bf16.mxu0 0
      %534 = vmatpush1.bf16.msra.mxu0 0
      %535 = vmatprep.subr.bf16.mxu0 0
      %536 = vmatpush1.bf16.msra.mxu0 0
      %537 = vmatprep.subr.bf16.mxu0 0
      %538 = vmatpush1.bf16.msra.mxu0 0
      %539 = vmatprep.subr.bf16.mxu0 0
      %540 = vmatpush1.bf16.msra.mxu0 0
      %541 = vmatprep.subr.bf16.mxu0 0
      %542 = vmatpush1.bf16.msra.mxu0 0
      %543 = vmatprep.subr.bf16.mxu0 0
      %544 = vmatpush1.bf16.msra.mxu0 0
      %545 = vmatprep.subr.bf16.mxu0 0
      %546 = vmatpush1.bf16.msra.mxu0 0
      %547 = vmatprep.mubr.bf16.mxu0 0
      %548 = vmatmul.mubr.bf16.gmra.mrb[0].mxu0 %v509
      %v549 = vpop.f32.mrb[0].mxu0
      %v550 = vadd.f32 0.0, %v549
      %v551 = vpop.f32.mrb[0].mxu0
      %v552 = vadd.f32 0.0, %v551
      %v553 = vpop.f32.mrb[0].mxu0
      %v554 = vpop.f32.mrb[0].mxu0
      %555 = vdwg.mxu0
      %v556 = vrot.slane %v321, 4
      %v557 = vrot.slane %v322, 4
      %v558 = vrot.slane %v323, 4
      %559 = vrot.lane.b32.xlu0 %v556, 112
      %v560 = vpop.permute.xlu0 %559
      %561 = vrot.lane.b32.xlu0 %v557, 112
      %v562 = vpop.permute.xlu0 %561
      %563 = vrot.lane.b32.xlu0 %v558, 112
      %v564 = vpop.permute.xlu0 %563
      %v565 = vsel %vm499, %v560, %v562
      %v566 = vsel %vm499, %v562, %v564
      %v570 = vrot.slane %v357, 2
      %v571 = vrot.slane %v358, 2
      %v572 = vrot.slane %v359, 2
      %573 = vrot.lane.b32.xlu0 %v570, 111
      %v574 = vpop.permute.xlu0 %573
      %575 = vrot.lane.b32.xlu0 %v571, 111
      %v576 = vpop.permute.xlu0 %575
      %577 = vrot.lane.b32.xlu0 %v572, 111
      %v578 = vpop.permute.xlu0 %577
      %vm579 = vcmask 908288
      %v580 = vsel %vm579, %v574, %v576
      %v581 = vsel %vm579, %v576, %v578
      %v583 = vsel %vm441, %v429, %v565
      %v585 = vsel %vm441, %v431, %v566
      %vm586 = vcmask 1045504
      %v588 = vsel %vm586, %v583, %v580
      %v591 = vsel %vm586, %v585, %v581
      %593 = vrot.lane.b32.xlu0 %v434, 108
      %v594 = vpop.permute.xlu0 %593
      %v596 = vsel %vm312, %v594, 0
      %598 = vmatprep.subr.bf16.mxu0 %v591
      %599 = vmatpush1.bf16.msra.mxu0 %v588
      %600 = vmatprep.subr.bf16.mxu0 0
      %601 = vmatpush1.bf16.msra.mxu0 0
      %602 = vmatprep.subr.bf16.mxu0 0
      %603 = vmatpush1.bf16.msra.mxu0 0
      %604 = vmatprep.subr.bf16.mxu0 0
      %605 = vmatpush1.bf16.msra.mxu0 0
      %606 = vmatprep.subr.bf16.mxu0 0
      %607 = vmatpush1.bf16.msra.mxu0 0
      %608 = vmatprep.subr.bf16.mxu0 0
      %609 = vmatpush1.bf16.msra.mxu0 0
      %610 = vmatprep.subr.bf16.mxu0 0
      %611 = vmatpush1.bf16.msra.mxu0 0
      %612 = vmatprep.subr.bf16.mxu0 0
      %613 = vmatpush1.bf16.msra.mxu0 0
      %614 = vmatprep.subr.bf16.mxu0 0
      %615 = vmatpush1.bf16.msra.mxu0 0
      %616 = vmatprep.subr.bf16.mxu0 0
      %617 = vmatpush1.bf16.msra.mxu0 0
      %618 = vmatprep.subr.bf16.mxu0 0
      %619 = vmatpush1.bf16.msra.mxu0 0
      %620 = vmatprep.subr.bf16.mxu0 0
      %621 = vmatpush1.bf16.msra.mxu0 0
      %622 = vmatprep.subr.bf16.mxu0 0
      %623 = vmatpush1.bf16.msra.mxu0 0
      %624 = vmatprep.subr.bf16.mxu0 0
      %625 = vmatpush1.bf16.msra.mxu0 0
      %626 = vmatprep.subr.bf16.mxu0 0
      %627 = vmatpush1.bf16.msra.mxu0 0
      %628 = vmatprep.subr.bf16.mxu0 0
      %629 = vmatpush1.bf16.msra.mxu0 0
      %630 = vmatprep.mubr.bf16.mxu0 0
      %631 = vmatmul.mubr.bf16.gmra.mrb[0].mxu0 %v596
      %v632 = vpop.f32.mrb[0].mxu0
      %v633 = vadd.f32 0.0, %v632
      %v634 = vpop.f32.mrb[0].mxu0
      %v635 = vadd.f32 0.0, %v634
      %v636 = vpop.f32.mrb[0].mxu0
      %v637 = vpop.f32.mrb[0].mxu0
      %638 = vdwg.mxu0
      %p639 = scmp.eq.s32.totalorder %s20, 0
      %p640 = scmp.eq.s32.totalorder %s21, 0
      %p641 = pnand %p639, %p640
      %p642 = pneg %p641
      // Predicated region
      $region41: #{upsampling_conv_bn_relu.1} parent=39 // pred_check
        _
      $region42: #{upsampling_conv_bn_relu.1} parent=39 // pred_check_branch
        %644 = sbr.rel (%p641) target = $region44
      $region43: #{upsampling_conv_bn_relu.1} parent=39 // pred_region
        %645 = vst.msk [vmem:[#allocation2] sm:$0xff] %vm276, 0.0
        %646 = vst.msk [vmem:[#allocation3] sm:$0xff] %vm276, 0.0
        %647 = vst.msk [vmem:[#allocation4] sm:$0xff] %vm276, 0.0
      $region44: #{upsampling_conv_bn_relu.1} parent=39 // pred_fallthru
        _
      // Predicated region
      $region45: #{upsampling_conv_bn_relu.1} parent=39 // pred_check
        %p648 = pneg %p639
      $region46: #{upsampling_conv_bn_relu.1} parent=39 // pred_check_branch
        %650 = sbr.rel (%p648) target = $region48
      $region47: #{upsampling_conv_bn_relu.1} parent=39 // pred_region
        %v651 = vadd.f32 %v407, %v409
        %652 = vadd.xlane.f32.xlu0 %v651
        %v653 = vpop.xlane.xlu0 %652
        %v654 = vadd.f32 %v481, %v483
        %655 = vadd.xlane.f32.xlu0 %v654
        %v656 = vpop.xlane.xlu0 %655
        %v657 = vadd.f32 %v653, %v656
        %v658 = vadd.f32 %v550, %v552
        %659 = vadd.xlane.f32.xlu0 %v658
        %v660 = vpop.xlane.xlu0 %659
        %v661 = vadd.f32 %v657, %v660
        %v662 = vadd.f32 %v633, %v635
        %663 = vadd.xlane.f32.xlu0 %v662
        %v664 = vpop.xlane.xlu0 %663
        %v665 = vadd.f32 %v661, %v664
        %v666 = vmul.f32 %v665, 0.0009765625
        %v667 = vsub.f32 %v407, %v666
        %v668 = vsub.f32 %v409, %v666
        %v669 = vmul.f32 %v667, %v667
        %v670 = vmul.f32 %v668, %v668
        %v671 = vadd.f32 %v669, %v670
        %672 = vadd.xlane.f32.xlu0 %v671
        %v673 = vpop.xlane.xlu0 %672
        %v674 = vadd.f32 %v673, 0.0
        %v675 = vsub.f32 %v481, %v666
        %v676 = vsub.f32 %v483, %v666
        %v677 = vmul.f32 %v675, %v675
        %v678 = vmul.f32 %v676, %v676
        %v679 = vadd.f32 %v677, %v678
        %680 = vadd.xlane.f32.xlu0 %v679
        %v681 = vpop.xlane.xlu0 %680
        %v682 = vadd.f32 %v674, %v681
        %v683 = vsub.f32 %v550, %v666
        %v684 = vsub.f32 %v552, %v666
        %v685 = vmul.f32 %v683, %v683
        %v686 = vmul.f32 %v684, %v684
        %v687 = vadd.f32 %v685, %v686
        %688 = vadd.xlane.f32.xlu0 %v687
        %v689 = vpop.xlane.xlu0 %688
        %v690 = vadd.f32 %v682, %v689
        %v691 = vsub.f32 %v633, %v666
        %v692 = vsub.f32 %v635, %v666
        %v693 = vmul.f32 %v691, %v691
        %v694 = vmul.f32 %v692, %v692
        %v695 = vadd.f32 %v693, %v694
        %696 = vadd.xlane.f32.xlu0 %v695
        %v697 = vpop.xlane.xlu0 %696
        %v698 = vadd.f32 %v690, %v697
        %v699 = vld [vmem:[#allocation2] sm:$0xff]
        %v700 = vadd.f32 %v699, %v665
        %701 = vst.msk [vmem:[#allocation2] sm:$0xff] %vm276, %v700
        %v702 = vld [vmem:[#allocation3] sm:$0xff]
        %v703 = vadd.f32 %v702, %v698
        %704 = vst.msk [vmem:[#allocation3] sm:$0xff] %vm276, %v703
        %v705 = vld [vmem:[#allocation4] sm:$0xff]
        %v706 = vmul.f32 %v666, %v666
        %v707 = vadd.f32 %v705, %v706
        %708 = vst.msk [vmem:[#allocation4] sm:$0xff] %vm276, %v707
      $region48: #{upsampling_conv_bn_relu.1} parent=39 // pred_fallthru
        _
      %p709 = scmp.eq.s32.totalorder %s20, 1
      // Predicated region
      $region49: #{upsampling_conv_bn_relu.1} parent=39 // pred_check
        %p710 = pneg %p709
      $region50: #{upsampling_conv_bn_relu.1} parent=39 // pred_check_branch
        %712 = sbr.rel (%p710) target = $region52
      $region51: #{upsampling_conv_bn_relu.1} parent=39 // pred_region
        %v713 = vld [vmem:[#allocation2] sm:$0xff]
        %v714 = vmul.f32 %v713, 0.00048828125
        %v715 = vld [vmem:[#allocation3] sm:$0xff]
        %v716 = vld [vmem:[#allocation4] sm:$0xff]
        %v717 = vmul.f32 %v716, 1024.0
        %v718 = vadd.f32 %v715, %v717
        %v719 = vmul.f32 %v718, 0.00048828125
        %v720 = vmul.f32 %v714, %v714
        %v721 = vsub.f32 %v719, %v720
        %v722 = vmax.f32 %v721, 0.0
        %v723 = vld [vmem:[%s3] sm:$0xff]
        %v724 = vadd.f32 %v722, 1e-05
        %v725 = vrsqrt.pop %v724
        %v726 = vmul.f32 %v723, %v725
        %v727 = vld [vmem:[%s4] sm:$0xff]
        %v728 = vmul.f32 %v714, %v726
        %v729 = vsub.f32 %v727, %v728
        %731 = vset.pattern.permute.xlu0 0
        %732 = vperm.xlu0 %731, %v726
        %v733 = vpop.permute.xlu0 %732
        %v735 = vmul.f32 %v407, %v733
        %v736 = vmul.f32 %v409, %v733
        %738 = vset.pattern.permute.xlu0 0
        %739 = vperm.xlu0 %738, %v729
        %v740 = vpop.permute.xlu0 %739
        %v742 = vadd.f32 %v735, %v740
        %v743 = vadd.f32 %v736, %v740
        %v744 = vmax.f32 %v742, 0.0
        %v745 = vmax.f32 %v743, 0.0
        %746 = vst [vmem:[%s240] sm:$0xff] %v744
        %747 = vst [vmem:[%s240 + $0x8] sm:$0xff] %v745
        %v748 = vmul.f32 %v481, %v733
        %v749 = vmul.f32 %v483, %v733
        %v750 = vadd.f32 %v748, %v740
        %v751 = vadd.f32 %v749, %v740
        %v752 = vmax.f32 %v750, 0.0
        %v753 = vmax.f32 %v751, 0.0
        %s754 = scalar_lea.vmem %s240, 16
        %755 = vst [vmem:[%s754] sm:$0xff] %v752
        %756 = vst [vmem:[%s754 + $0x8] sm:$0xff] %v753
        %v757 = vmul.f32 %v550, %v733
        %v758 = vmul.f32 %v552, %v733
        %v759 = vadd.f32 %v757, %v740
        %v760 = vadd.f32 %v758, %v740
        %v761 = vmax.f32 %v759, 0.0
        %v762 = vmax.f32 %v760, 0.0
        %s763 = scalar_lea.vmem %s240, 32
        %764 = vst [vmem:[%s763] sm:$0xff] %v761
        %765 = vst [vmem:[%s763 + $0x8] sm:$0xff] %v762
        %v766 = vmul.f32 %v633, %v733
        %v767 = vmul.f32 %v635, %v733
        %v768 = vadd.f32 %v766, %v740
        %v769 = vadd.f32 %v767, %v740
        %v770 = vmax.f32 %v768, 0.0
        %v771 = vmax.f32 %v769, 0.0
        %s772 = scalar_lea.vmem %s240, 48
        %773 = vst [vmem:[%s772] sm:$0xff] %v770
        %774 = vst [vmem:[%s772 + $0x8] sm:$0xff] %v771
      $region52: #{upsampling_conv_bn_relu.1} parent=39 // pred_fallthru
        _
      %s775 = smul.u32 %s21, %s20
      %p776 = scmp.lt.s32.totalorder %s775, 1
      %s777 = scalar_select %p776, %s775, 1
      %s778 = smul.addr %s777, 8
      %s779 = smul.addr %s778, 8
      %s780 = scalar_lea.vmem %s5, %s779
      // Predicated region
      $region53: #{upsampling_conv_bn_relu.1} parent=39 // pred_check
        %p781 = pneg %p158
      $region54: #{upsampling_conv_bn_relu.1} parent=39 // pred_check_branch
        %783 = sbr.rel (%p781) target = $region56
      $region55: #{upsampling_conv_bn_relu.1} parent=39 // pred_region
        %s784 = smul.u32 %s21, %s20
      $region56: #{upsampling_conv_bn_relu.1} parent=39 // pred_fallthru
        _
    $region40: #{upsampling_conv_bn_relu.1} parent=5 // pred_fallthru
      _
    %p785 = scmp.le.s32.totalorder 2, %s11
    // Predicated region
    $region57: #{upsampling_conv_bn_relu.1} parent=5 // pred_check
      %p786 = pneg %p785
    $region58: #{upsampling_conv_bn_relu.1} parent=5 // pred_check_branch
      %788 = sbr.rel (%p786) target = $region60
    $region59: #{upsampling_conv_bn_relu.1} parent=5 // pred_region
      %s789 = ssub.s32 %s11, 2
      // Predicated region
      $region61: #{upsampling_conv_bn_relu.1} parent=59 // pred_check
        %p790 = pneg %p164
      $region62: #{upsampling_conv_bn_relu.1} parent=59 // pred_check_branch
        %792 = sbr.rel (%p790) target = $region64
      $region63: #{upsampling_conv_bn_relu.1} parent=59 // pred_region
        %s793 = smul.u32 %s23, %s22
        %p794 = scmp.lt.s32.totalorder %s793, 1
        %s795 = scalar_select %p794, %s793, 1
        %s796 = smul.addr %s795, 8
        %s797 = smul.addr %s796, 8
        %s798 = scalar_lea.vmem %s5, %s797
      $region64: #{upsampling_conv_bn_relu.1} parent=59 // pred_fallthru
        _
    $region60: #{upsampling_conv_bn_relu.1} parent=5 // pred_fallthru
      _
  $region6: #{upsampling_conv_bn_relu.1} parent=0 // loop_footer
    %s15 = sadd.s32 1, %s11
  $region7: #{upsampling_conv_bn_relu.1} parent=0 // loop_footer_branch
    %10 = sbr.rel target = $region3
  $region8: #{upsampling_conv_bn_relu.1} parent=0 // loop_exit
    _

</llo_original>
